<compile_context>
chip_gen: v7x
topology: tpu7x:2x2x1
jax: 0.10.0
libtpu: 0.0.40
codegen_flags: <defaults>
</compile_context>

<pallas_src>
import math

import jax
import jax.numpy as jnp
from jax.experimental import pallas as pl
from jax.experimental.pallas import tpu as pltpu


# ---------------------------------------------------------------------------
# Pass 1: per-(packed)-column batch statistics of the unnormalized conv output.
# Reads x only; y lives in registers and is reduced immediately.
# ---------------------------------------------------------------------------
def stats_kernel(x_ref, w_ref, b_ref, sum_ref, sq_ref):
    i = pl.program_id(0)

    @pl.when(i == 0)
    def _():
        sum_ref[...] = jnp.zeros_like(sum_ref)
        sq_ref[...] = jnp.zeros_like(sq_ref)

    y = jnp.dot(x_ref[...], w_ref[...], preferred_element_type=jnp.float32) + b_ref[...]
    sum_ref[...] += jnp.sum(y, axis=0, keepdims=True)
    sq_ref[...] += jnp.sum(y * y, axis=0, keepdims=True)


# ---------------------------------------------------------------------------
# Pass 2: fused ConvTranspose + BatchNorm.  BN is folded into the (block-
# diagonal, lane-packed) weight/bias, so this is one matmul writing the
# normalized output directly with a lane-dense (multiple-of-128) last dim.
# ---------------------------------------------------------------------------
def fused_conv_bn_kernel(x_ref, w_ref, b_ref, o_ref):
    o_ref[...] = (
        jnp.dot(x_ref[...], w_ref[...], preferred_element_type=jnp.float32) + b_ref[...]
    )


def unit_tcn1_forward(x, w, b, gamma, beta, eps=1e-5, tile_rows=1024):
    """x: (N, C_in, T, V).  w: (C_in, C_out, 2) ConvTranspose taps.  -> (N, C_out, 2T, V)."""
    N, C_in, T, V = x.shape
    C_out = w.shape[1]
    C2 = 2 * C_out
    M = N * T * V

    # Lane-dense packing: k rows per packed row so CP = k*C2 is a multiple of 128.
    k = 128 // math.gcd(C2, 128)
    KP = k * C_in
    CP = k * C2

    Mp = -(-M // k)                      # packed rows needed
    tm = min(tile_rows, Mp)              # packed rows per tile
    if tm < Mp:
        tm = max(8, (tm // 8) * 8)       # (8,128) sublane constraint when not full-dim
    Mp_pad = -(-Mp // tm) * tm
    M_pad = Mp_pad * k
    n_pad = M_pad - M                    # zero-padded original rows
    grid = (Mp_pad // tm,)

    # Pack inputs: NCHW -> (M, C_in) -> zero-pad -> (Mp_pad, k*C_in)
    x_flat = jnp.transpose(x, (0, 2, 3, 1)).reshape(M, C_in).astype(jnp.float32)
    if n_pad:
        x_flat = jnp.pad(x_flat, ((0, n_pad), (0, 0)))
    x_packed = x_flat.reshape(Mp_pad, KP)

    # Two time-taps concatenated along the output-channel axis: (C_in, 2*C_out)
    w_cat = jnp.concatenate([w[:, :, 0], w[:, :, 1]], axis=1).astype(jnp.float32)
    b_cat = jnp.concatenate([b, b]).astype(jnp.float32)                  # (C2,)
    eye_k = jnp.eye(k, dtype=jnp.float32)
    w_block_raw = jnp.kron(eye_k, w_cat)                                 # (KP, CP)
    b_block_raw = jnp.tile(b_cat, k).reshape(1, CP)

    # Explicit VMEM budget (headroom vs v7x's 64 MiB physical VMEM).
    def _tile_bytes(r, c):
        return (-(-r // 8) * 8) * (-(-c // 128) * 128) * 4

    est = (2 * _tile_bytes(tm, KP) + 2 * _tile_bytes(tm, CP)
           + 2 * _tile_bytes(KP, CP) + 6 * _tile_bytes(1, CP) + (4 << 20))
    vmem_limit = int(min(max(est, 16 << 20), 48 << 20))

    # ----------------------- pass 1: batch statistics -----------------------
    s_big, sq_big = pl.pallas_call(
        stats_kernel,
        out_shape=(
            jax.ShapeDtypeStruct((1, CP), jnp.float32),
            jax.ShapeDtypeStruct((1, CP), jnp.float32),
        ),
        grid_spec=pltpu.PrefetchScalarGridSpec(
            num_scalar_prefetch=0,
            grid=grid,
            in_specs=[
                pl.BlockSpec((tm, KP), lambda i: (i, 0)),
                pl.BlockSpec((KP, CP), lambda i: (0, 0)),
                pl.BlockSpec((1, CP), lambda i: (0, 0)),
            ],
            out_specs=(
                pl.BlockSpec((1, CP), lambda i: (0, 0)),   # resident accumulators
                pl.BlockSpec((1, CP), lambda i: (0, 0)),
            ),
        ),
        compiler_params=pltpu.CompilerParams(
            dimension_semantics=("arbitrary",),            # accumulator => keep serial
            vmem_limit_bytes=vmem_limit,
        ),
    )(x_packed, w_block_raw, b_block_raw)

    # Training-mode BatchNorm2d statistics (biased variance).
    # Padded all-zero rows contributed exactly the bias; subtract analytically.
    col_sum = jnp.sum(s_big.reshape(k, C2), axis=0) - n_pad * b_cat
    col_sq = jnp.sum(sq_big.reshape(k, C2), axis=0) - n_pad * b_cat * b_cat
    count = jnp.float32(2 * M)                             # N * (2T) * V per channel
    ch_sum = col_sum[:C_out] + col_sum[C_out:]
    ch_sq = col_sq[:C_out] + col_sq[C_out:]
    mean = ch_sum / count
    # TODO(synk): E[y^2]-mean^2 can cancel for very large M / strongly off-center
    # activations; switch to a shifted two-pass accumulation if that ever bites.
    var = jnp.maximum(ch_sq / count - mean * mean, 0.0)
    inv_std = jax.lax.rsqrt(var + eps)
    scale_c = gamma.astype(jnp.float32) * inv_std
    shift_c = beta.astype(jnp.float32) - mean * scale_c
    scale_cat = jnp.concatenate([scale_c, scale_c])        # (C2,)
    shift_cat = jnp.concatenate([shift_c, shift_c])

    # Fold BN into the conv: y_bn = x @ (W*scale) + (b*scale + shift)
    w_block_fold = jnp.kron(eye_k, w_cat * scale_cat[None, :])
    b_block_fold = jnp.tile(b_cat * scale_cat + shift_cat, k).reshape(1, CP)

    # ------------------ pass 2: fused conv + BN (lane-dense) ----------------
    out_packed = pl.pallas_call(
        fused_conv_bn_kernel,
        out_shape=jax.ShapeDtypeStruct((Mp_pad, CP), jnp.float32),
        grid_spec=pltpu.PrefetchScalarGridSpec(
            num_scalar_prefetch=0,
            grid=grid,
            in_specs=[
                pl.BlockSpec((tm, KP), lambda i: (i, 0)),
                pl.BlockSpec((KP, CP), lambda i: (0, 0)),
                pl.BlockSpec((1, CP), lambda i: (0, 0)),
            ],
            out_specs=pl.BlockSpec((tm, CP), lambda i: (i, 0)),
        ),
        compiler_params=pltpu.CompilerParams(
            dimension_semantics=("parallel",),             # no cross-iteration dependency
            vmem_limit_bytes=vmem_limit,
        ),
    )(x_packed, w_block_fold, b_block_fold)

    # Unpack: (Mp_pad, k*C2) -> (M, C2) -> (N, C_out, 2T, V).  The final permute
    # back to NCHW is inherent to the module interface and done by XLA.
    out_flat = out_packed.reshape(M_pad, C2)[:M]
    out = out_flat.reshape(N, T, V, 2, C_out)
    out = jnp.transpose(out, (0, 4, 1, 3, 2)).reshape(N, C_out, 2 * T, V)
    return out


def _reference(x, w, b, gamma, beta, eps=1e-5):
    N, C_in, T, V = x.shape
    C_out = w.shape[1]
    y = jnp.einsum('nctv,cok->noktv', x, w) + b[None, :, None, None, None]
    y = jnp.transpose(y, (0, 1, 3, 2, 4)).reshape(N, C_out, 2 * T, V)
    mean = y.mean(axis=(0, 2, 3), keepdims=True)
    var = y.var(axis=(0, 2, 3), keepdims=True)
    return (y - mean) * jax.lax.rsqrt(var + eps) * gamma[None, :, None, None] \
        + beta[None, :, None, None]


if __name__ == "__main__":
    key = jax.random.PRNGKey(0)
    k_x, k_w, k_b, k_g, k_be, k_x2 = jax.random.split(key, 6)

    # --- primary toy shape -------------------------------------------------
    N, C_in, C_out, T, V = 2, 4, 8, 16, 16
    x = jax.random.normal(k_x, (N, C_in, T, V), dtype=jnp.float32)
    # ConvTranspose2d weight (C_in, C_out, kH=2, kW=1); kaiming_normal_(fan_out)
    # has fan_out = C_in * kH * kW = C_in * 2.
    fan_out = C_in * 2 * 1
    std = (2.0 / fan_out) ** 0.5
    w = jax.random.normal(k_w, (C_in, C_out, 2), dtype=jnp.float32) * std
    b = jnp.zeros((C_out,), jnp.float32)          # conv_init: bias = 0
    gamma = jnp.ones((C_out,), jnp.float32)       # bn_init(bn, 1)
    beta = jnp.zeros((C_out,), jnp.float32)

    out = unit_tcn1_forward(x, w, b, gamma, beta)
    jax.block_until_ready(out)
    ref = _reference(x, w, b, gamma, beta)
    assert out.shape == (N, C_out, 2 * T, V)
    assert jnp.allclose(out, ref, atol=1e-4, rtol=1e-4)

    # --- second shape: exercises row padding + nonzero bias / BN affine -----
    N2, T2, V2 = 1, 5, 7                          # M = 35 -> needs zero padding
    x2 = jax.random.normal(k_x2, (N2, C_in, T2, V2), dtype=jnp.float32)
    b2 = 0.1 * jax.random.normal(k_b, (C_out,), dtype=jnp.float32)
    g2 = 1.0 + 0.1 * jax.random.normal(k_g, (C_out,), dtype=jnp.float32)
    be2 = 0.1 * jax.random.normal(k_be, (C_out,), dtype=jnp.float32)
    out2 = unit_tcn1_forward(x2, w, b2, g2, be2)
    jax.block_until_ready(out2)
    ref2 = _reference(x2, w, b2, g2, be2)
    assert out2.shape == (N2, C_out, 2 * T2, V2)
    assert jnp.allclose(out2, ref2, atol=1e-4, rtol=1e-4)

    print("KERNEL_OK")
</pallas_src>

<mosaic_0001>
module attributes {stable_mosaic.version = 11 : i64} {
  func.func @stats_kernel(%arg0: i32, %arg1: memref<64x32xf32, #tpu.memory_space<vmem>>, %arg2: memref<32x128xf32, #tpu.memory_space<vmem>>, %arg3: memref<1x128xf32, #tpu.memory_space<vmem>>, %arg4: memref<1x128xf32, #tpu.memory_space<vmem>>, %arg5: memref<1x128xf32, #tpu.memory_space<vmem>>) attributes {dimension_semantics = [#tpu.dimension_semantics<arbitrary>], iteration_bounds = array<i64: 1>, scalar_prefetch = 0 : i64, scratch_operands = 0 : i64, tpu.core_type = #tpu.core_type<tc>, window_params = [{transform_indices = @transform_0, window_bounds = array<i64: 64, 32>}, {pipeline_mode = #tpu.pipeline_mode<synchronous>, transform_indices = @transform_1, window_bounds = array<i64: 32, 128>}, {pipeline_mode = #tpu.pipeline_mode<synchronous>, transform_indices = @transform_2, window_bounds = array<i64: 1, 128>}, {pipeline_mode = #tpu.pipeline_mode<synchronous>, transform_indices = @transform_3, window_bounds = array<i64: 1, 128>}, {pipeline_mode = #tpu.pipeline_mode<synchronous>, transform_indices = @transform_4, window_bounds = array<i64: 1, 128>}]} {
    %c0_i32 = arith.constant 0 : i32
    %0 = arith.cmpi eq, %arg0, %c0_i32 : i32
    %1 = arith.extui %0 : i1 to i32
    %c0_i32_0 = arith.constant 0 : i32
    %2 = arith.cmpi ne, %1, %c0_i32_0 : i32
    scf.if %2 {
      %cst_16 = arith.constant 0.000000e+00 : f32
      %20 = vector.broadcast %cst_16 : f32 to vector<1x128xf32>
      %c0_17 = arith.constant 0 : index
      %c0_18 = arith.constant 0 : index
      %21 = vector.load %arg4[%c0_17, %c0_18] : memref<1x128xf32, #tpu.memory_space<vmem>>, vector<1x128xf32>
      tpu.vector_store %arg4[%c0_17, %c0_18], %20 {strides = array<i32>} : memref<1x128xf32, #tpu.memory_space<vmem>>, vector<1x128xf32>,
      %cst_19 = arith.constant 0.000000e+00 : f32
      %22 = vector.broadcast %cst_19 : f32 to vector<1x128xf32>
      %c0_20 = arith.constant 0 : index
      %c0_21 = arith.constant 0 : index
      %23 = vector.load %arg5[%c0_20, %c0_21] : memref<1x128xf32, #tpu.memory_space<vmem>>, vector<1x128xf32>
      tpu.vector_store %arg5[%c0_20, %c0_21], %22 {strides = array<i32>} : memref<1x128xf32, #tpu.memory_space<vmem>>, vector<1x128xf32>,
    } else {
    }
    %c0 = arith.constant 0 : index
    %c0_1 = arith.constant 0 : index
    %3 = vector.load %arg1[%c0, %c0_1] : memref<64x32xf32, #tpu.memory_space<vmem>>, vector<64x32xf32>
    %c0_2 = arith.constant 0 : index
    %c0_3 = arith.constant 0 : index
    %4 = vector.load %arg2[%c0_2, %c0_3] : memref<32x128xf32, #tpu.memory_space<vmem>>, vector<32x128xf32>
    %cst = arith.constant dense<0.000000e+00> : vector<64x128xf32>
    %5 = tpu.matmul %3, %4, %cst {dimension_numbers = #tpu.dot_dimension_numbers<[1], [0], [0], [1], [0, 0, 1, 1], [], []>} : vector<64x32xf32>, vector<32x128xf32>, vector<64x128xf32> -> vector<64x128xf32>
    %c0_4 = arith.constant 0 : index
    %c0_5 = arith.constant 0 : index
    %6 = vector.load %arg3[%c0_4, %c0_5] : memref<1x128xf32, #tpu.memory_space<vmem>>, vector<1x128xf32>
    %7 = vector.broadcast %6 : vector<1x128xf32> to vector<64x128xf32>
    %8 = arith.addf %5, %7 : vector<64x128xf32>
    %c0_6 = arith.constant 0 : index
    %c0_7 = arith.constant 0 : index
    %9 = vector.load %arg4[%c0_6, %c0_7] : memref<1x128xf32, #tpu.memory_space<vmem>>, vector<1x128xf32>
    %cst_8 = arith.constant dense<0.000000e+00> : vector<128xf32>
    %10 = vector.multi_reduction <add>, %8, %cst_8 [0] : vector<64x128xf32> to vector<128xf32>
    %11 = vector.shape_cast %10 : vector<128xf32> to vector<1x128xf32>
    %12 = arith.addf %9, %11 : vector<1x128xf32>
    %c0_9 = arith.constant 0 : index
    %c0_10 = arith.constant 0 : index
    %13 = vector.load %arg4[%c0_9, %c0_10] : memref<1x128xf32, #tpu.memory_space<vmem>>, vector<1x128xf32>
    tpu.vector_store %arg4[%c0_9, %c0_10], %12 {strides = array<i32>} : memref<1x128xf32, #tpu.memory_space<vmem>>, vector<1x128xf32>,
    %c0_11 = arith.constant 0 : index
    %c0_12 = arith.constant 0 : index
    %14 = vector.load %arg5[%c0_11, %c0_12] : memref<1x128xf32, #tpu.memory_space<vmem>>, vector<1x128xf32>
    %15 = arith.mulf %8, %8 : vector<64x128xf32>
    %cst_13 = arith.constant dense<0.000000e+00> : vector<128xf32>
    %16 = vector.multi_reduction <add>, %15, %cst_13 [0] : vector<64x128xf32> to vector<128xf32>
    %17 = vector.shape_cast %16 : vector<128xf32> to vector<1x128xf32>
    %18 = arith.addf %14, %17 : vector<1x128xf32>
    %c0_14 = arith.constant 0 : index
    %c0_15 = arith.constant 0 : index
    %19 = vector.load %arg5[%c0_14, %c0_15] : memref<1x128xf32, #tpu.memory_space<vmem>>, vector<1x128xf32>
    tpu.vector_store %arg5[%c0_14, %c0_15], %18 {strides = array<i32>} : memref<1x128xf32, #tpu.memory_space<vmem>>, vector<1x128xf32>,
    return
  }
  func.func @transform_0(%arg0: i32) -> (i32, i32) {
    %c0_i32 = arith.constant 0 : i32
    %c0_i32_0 = arith.constant 0 : i32
    return %arg0, %c0_i32 : i32, i32
  }
  func.func @transform_1(%arg0: i32) -> (i32, i32) {
    %c0_i32 = arith.constant 0 : i32
    %c0_i32_0 = arith.constant 0 : i32
    %c0_i32_1 = arith.constant 0 : i32
    return %c0_i32, %c0_i32_0 : i32, i32
  }
  func.func @transform_2(%arg0: i32) -> (i32, i32) {
    %c0_i32 = arith.constant 0 : i32
    %c0_i32_0 = arith.constant 0 : i32
    %c0_i32_1 = arith.constant 0 : i32
    return %c0_i32, %c0_i32_0 : i32, i32
  }
  func.func @transform_3(%arg0: i32) -> (i32, i32) {
    %c0_i32 = arith.constant 0 : i32
    %c0_i32_0 = arith.constant 0 : i32
    %c0_i32_1 = arith.constant 0 : i32
    return %c0_i32, %c0_i32_0 : i32, i32
  }
  func.func @transform_4(%arg0: i32) -> (i32, i32) {
    %c0_i32 = arith.constant 0 : i32
    %c0_i32_0 = arith.constant 0 : i32
    %c0_i32_1 = arith.constant 0 : i32
    return %c0_i32, %c0_i32_0 : i32, i32
  }
}

</mosaic_0001>

<llo_original>
// kernel: tpu_custom_call.1
$region0: #{tpu_custom_call.1}
  #allocation0 [shape = 'u32[]', space=smem, size = 0x4, offset = 0x4, fixed_abs, tag = 'smem constant byte address 0x4 - core index']
  #allocation1 [shape = 'u32[144,128]{1,0:T(1,128)}', space=vmem, size = 0x12000, scoped, tag = 'internal scratch']
  %s0 = inlined_call_operand.vmem [shape: f32[64,32], index: 0, kind: input, shape index: {}]
  %s1 = inlined_call_operand.vmem [shape: f32[32,128], index: 1, kind: input, shape index: {}]
  %s2 = inlined_call_operand.vmem [shape: f32[1,128], index: 2, kind: input, shape index: {}]
  %s3 = inlined_call_operand.hbm [shape: f32[1,128], index: 3, kind: output, shape index: {0}]
  %s4 = inlined_call_operand.hbm [shape: f32[1,128], index: 4, kind: output, shape index: {1}]
  %5 = xla_tuple %s3, %s4
  %s6 = sld [smem:[#allocation0]]
  $region34: #{tpu_custom_call.1} parent=0
    _
  %s8 = ssub.s32 1, %s6
  %s9 = scalar_select 0, %s8, %s6
  $region1: #{tpu_custom_call.1} parent=0
    #allocation2 [shape = 'u8[512]{0}', space=vmem, size = 0x400, scoped, tag = 'output window, operand 0, single buffered']
    #allocation3 [shape = 's32[1]{0}', space=sflag, size = 0x4, scoped, tag = 'scoped memory for tpu_custom_call.1']
    #allocation4 [shape = 'u8[512]{0}', space=vmem, size = 0x400, scoped, tag = 'output window, operand 1, single buffered']
    #allocation5 [shape = 's32[1]{0}', space=sflag, size = 0x4, scoped, tag = 'scoped memory for tpu_custom_call.1']
    %10 = vsyncpa [#allocation3], 0
    %11 = vsyncpa [#allocation5], 0
    // Predicated region
    $region2: #{tpu_custom_call.1} parent=1 // pred_check
      _
    $region3: #{tpu_custom_call.1} parent=1 // pred_check_branch
      %13 = sbr.rel (0) target = $region5
    $region4: #{tpu_custom_call.1} parent=1 // pred_region
      _
    $region5: #{tpu_custom_call.1} parent=1 // pred_fallthru
      _
    // Predicated region
    $region6: #{tpu_custom_call.1} parent=1 // pred_check
      _
    $region7: #{tpu_custom_call.1} parent=1 // pred_check_branch
      %15 = sbr.rel (0) target = $region9
    $region8: #{tpu_custom_call.1} parent=1 // pred_region
      _
    $region9: #{tpu_custom_call.1} parent=1 // pred_fallthru
      _
    // Predicated region
    $region10: #{tpu_custom_call.1} parent=1 // pred_check
      _
    $region11: #{tpu_custom_call.1} parent=1 // pred_check_branch
      %17 = sbr.rel (0) target = $region13
    $region12: #{tpu_custom_call.1} parent=1 // pred_region
      _
    $region13: #{tpu_custom_call.1} parent=1 // pred_fallthru
      _
    %p18 = scmp.eq.s32.totalorder 0, 0
    // Predicated region
    $region14: #{tpu_custom_call.1} parent=1 // pred_check
      %p19 = pneg %p18
    $region15: #{tpu_custom_call.1} parent=1 // pred_check_branch
      %21 = sbr.rel (%p19) target = $region17
    $region16: #{tpu_custom_call.1} parent=1 // pred_region
      %22 = vst [vmem:[#allocation2] sm:$0x1] 0.0
      %23 = vst [vmem:[#allocation4] sm:$0x1] 0.0
    $region17: #{tpu_custom_call.1} parent=1 // pred_fallthru
      _
    %v24 = vld [vmem:[%s0] sm:$0xff]
    %v25 = vld [vmem:[%s0 + $0x8] sm:$0xff]
    %v26 = vld [vmem:[%s0 + $0x10] sm:$0xff]
    %v27 = vld [vmem:[%s0 + $0x18] sm:$0xff]
    %v28 = vld [vmem:[%s0 + $0x20] sm:$0xff]
    %v29 = vld [vmem:[%s0 + $0x28] sm:$0xff]
    %v30 = vld [vmem:[%s0 + $0x30] sm:$0xff]
    %v31 = vld [vmem:[%s0 + $0x38] sm:$0xff]
    %v32 = vld [vmem:[%s1] sm:$0xff]
    %v33 = vld [vmem:[%s1 + $0x8] sm:$0xff]
    %v34 = vld [vmem:[%s1 + $0x10] sm:$0xff]
    %v35 = vld [vmem:[%s1 + $0x18] sm:$0xff]
    %v36 = vld [vmem:[%s2] sm:$0x1]
    %v38 = vlaneseq
    %v39 = vshrl.u32 %v38, 7
    %v40 = vsub.s32 0, %v39
    %v41 = vrot.slane %v36, %v40
    %vm43 = vcmask 261120
    %v45 = vsel %vm43, %v24, 0
    %v48 = vsel %vm43, %v25, 0
    %v51 = vsel %vm43, %v26, 0
    %v54 = vsel %vm43, %v27, 0
    %v57 = vsel %vm43, %v28, 0
    %v60 = vsel %vm43, %v29, 0
    %v63 = vsel %vm43, %v30, 0
    %v66 = vsel %vm43, %v31, 0
    %68 = vmatprep.subr.mxu0 0.0
    %69 = vmatpush1.msra.mxu0 %v32
    %70 = vmatprep.subr.mxu0 0.0
    %71 = vmatpush1.msra.mxu0 %v33
    %72 = vmatprep.subr.mxu0 0.0
    %73 = vmatpush1.msra.mxu0 %v34
    %74 = vmatprep.subr.mxu0 0.0
    %75 = vmatpush1.msra.mxu0 %v35
    %76 = vmatprep.subr.mxu0 0.0
    %77 = vmatpush1.msra.mxu0 0.0
    %78 = vmatprep.subr.mxu0 0.0
    %79 = vmatpush1.msra.mxu0 0.0
    %80 = vmatprep.subr.mxu0 0.0
    %81 = vmatpush1.msra.mxu0 0.0
    %82 = vmatprep.subr.mxu0 0.0
    %83 = vmatpush1.msra.mxu0 0.0
    %84 = vmatprep.subr.mxu0 0.0
    %85 = vmatpush1.msra.mxu0 0.0
    %86 = vmatprep.subr.mxu0 0.0
    %87 = vmatpush1.msra.mxu0 0.0
    %88 = vmatprep.subr.mxu0 0.0
    %89 = vmatpush1.msra.mxu0 0.0
    %90 = vmatprep.subr.mxu0 0.0
    %91 = vmatpush1.msra.mxu0 0.0
    %92 = vmatprep.subr.mxu0 0.0
    %93 = vmatpush1.msra.mxu0 0.0
    %94 = vmatprep.subr.mxu0 0.0
    %95 = vmatpush1.msra.mxu0 0.0
    %96 = vmatprep.subr.mxu0 0.0
    %97 = vmatpush1.msra.mxu0 0.0
    %98 = vmatprep.subr.mxu0 0.0
    %99 = vmatpush1.msra.mxu0 0.0
    %100 = vmatprep.subr.mxu0 0.0
    %101 = vmatpush1.msra.mxu0 0.0
    %102 = vmatprep.subr.mxu0 0.0
    %103 = vmatpush1.msra.mxu0 0.0
    %104 = vmatprep.subr.mxu0 0.0
    %105 = vmatpush1.msra.mxu0 0.0
    %106 = vmatprep.subr.mxu0 0.0
    %107 = vmatpush1.msra.mxu0 0.0
    %108 = vmatprep.subr.mxu0 0.0
    %109 = vmatpush1.msra.mxu0 0.0
    %110 = vmatprep.subr.mxu0 0.0
    %111 = vmatpush1.msra.mxu0 0.0
    %112 = vmatprep.subr.mxu0 0.0
    %113 = vmatpush1.msra.mxu0 0.0
    %114 = vmatprep.subr.mxu0 0.0
    %115 = vmatpush1.msra.mxu0 0.0
    %116 = vmatprep.subr.mxu0 0.0
    %117 = vmatpush1.msra.mxu0 0.0
    %118 = vmatprep.subr.mxu0 0.0
    %119 = vmatpush1.msra.mxu0 0.0
    %120 = vmatprep.subr.mxu0 0.0
    %121 = vmatpush1.msra.mxu0 0.0
    %122 = vmatprep.subr.mxu0 0.0
    %123 = vmatpush1.msra.mxu0 0.0
    %124 = vmatprep.subr.mxu0 0.0
    %125 = vmatpush1.msra.mxu0 0.0
    %126 = vmatprep.subr.mxu0 0.0
    %127 = vmatpush1.msra.mxu0 0.0
    %128 = vmatprep.subr.mxu0 0.0
    %129 = vmatpush1.msra.mxu0 0.0
    %130 = vmatprep.subr.mxu0 0.0
    %131 = vmatpush1.msra.mxu0 0.0
    %132 = vmatprep.mubr.f32.mxu0 0.0
    %133 = vmatmul.mubr.f32.gmra.mrb[0].mxu0 %v45
    %v134 = vpop.f32.mrb[0].mxu0
    %v135 = vadd.f32 %v41, %v134
    %v136 = vpop.f32.mrb[0].mxu0
    %137 = vmatprep.mubr.f32.mxu0 0.0
    %138 = vmatmul.mubr.f32.gmra.mrb[0].mxu0 %v48
    %v139 = vpop.f32.mrb[0].mxu0
    %v140 = vadd.f32 %v41, %v139
    %v141 = vpop.f32.mrb[0].mxu0
    %142 = vmatprep.mubr.f32.mxu0 0.0
    %143 = vmatmul.mubr.f32.gmra.mrb[0].mxu0 %v51
    %v144 = vpop.f32.mrb[0].mxu0
    %v145 = vadd.f32 %v41, %v144
    %v146 = vpop.f32.mrb[0].mxu0
    %147 = vmatprep.mubr.f32.mxu0 0.0
    %148 = vmatmul.mubr.f32.gmra.mrb[0].mxu0 %v54
    %v149 = vpop.f32.mrb[0].mxu0
    %v150 = vadd.f32 %v41, %v149
    %v151 = vpop.f32.mrb[0].mxu0
    %152 = vmatprep.mubr.f32.mxu0 0.0
    %153 = vmatmul.mubr.f32.gmra.mrb[0].mxu0 %v57
    %v154 = vpop.f32.mrb[0].mxu0
    %v155 = vadd.f32 %v41, %v154
    %v156 = vpop.f32.mrb[0].mxu0
    %157 = vmatprep.mubr.f32.mxu0 0.0
    %158 = vmatmul.mubr.f32.gmra.mrb[0].mxu0 %v60
    %v159 = vpop.f32.mrb[0].mxu0
    %v160 = vadd.f32 %v41, %v159
    %v161 = vpop.f32.mrb[0].mxu0
    %162 = vmatprep.mubr.f32.mxu0 0.0
    %163 = vmatmul.mubr.f32.gmra.mrb[0].mxu0 %v63
    %v164 = vpop.f32.mrb[0].mxu0
    %v165 = vadd.f32 %v41, %v164
    %v166 = vpop.f32.mrb[0].mxu0
    %167 = vmatprep.mubr.f32.mxu0 0.0
    %168 = vmatmul.mubr.f32.gmra.mrb[0].mxu0 %v66
    %v169 = vpop.f32.mrb[0].mxu0
    %v170 = vadd.f32 %v41, %v169
    %v171 = vpop.f32.mrb[0].mxu0
    %172 = vdwg.mxu0
    %v173 = vld [vmem:[#allocation2] sm:$0x1]
    %v174 = vadd.f32 %v135, %v140
    %v175 = vadd.f32 %v174, %v145
    %v176 = vadd.f32 %v175, %v150
    %v177 = vadd.f32 %v176, %v155
    %v178 = vadd.f32 %v177, %v160
    %v179 = vadd.f32 %v178, %v165
    %v180 = vadd.f32 %v179, %v170
    %v181 = vrot.slane %v180, 4
    %v182 = vadd.f32 %v180, %v181
    %v183 = vrot.slane %v182, 2
    %v184 = vadd.f32 %v182, %v183
    %v185 = vrot.slane %v184, 1
    %v186 = vadd.f32 %v184, %v185
    %v187 = vadd.f32 %v173, %v186
    %188 = vst [vmem:[#allocation2] sm:$0x1] %v187
    %v189 = vld [vmem:[#allocation4] sm:$0x1]
    %v190 = vmul.f32 %v135, %v135
    %v191 = vmul.f32 %v140, %v140
    %v192 = vmul.f32 %v145, %v145
    %v193 = vmul.f32 %v150, %v150
    %v194 = vmul.f32 %v155, %v155
    %v195 = vmul.f32 %v160, %v160
    %v196 = vmul.f32 %v165, %v165
    %v197 = vmul.f32 %v170, %v170
    %v198 = vadd.f32 %v190, %v191
    %v199 = vadd.f32 %v198, %v192
    %v200 = vadd.f32 %v199, %v193
    %v201 = vadd.f32 %v200, %v194
    %v202 = vadd.f32 %v201, %v195
    %v203 = vadd.f32 %v202, %v196
    %v204 = vadd.f32 %v203, %v197
    %v205 = vrot.slane %v204, 4
    %v206 = vadd.f32 %v204, %v205
    %v207 = vrot.slane %v206, 2
    %v208 = vadd.f32 %v206, %v207
    %v209 = vrot.slane %v208, 1
    %v210 = vadd.f32 %v208, %v209
    %v211 = vadd.f32 %v189, %v210
    %212 = vst [vmem:[#allocation4] sm:$0x1] %v211
    // Predicated region
    $region18: #{tpu_custom_call.1} parent=1 // pred_check
      _
    $region19: #{tpu_custom_call.1} parent=1 // pred_check_branch
      %214 = sbr.rel (0) target = $region21
    $region20: #{tpu_custom_call.1} parent=1 // pred_region
      %s216 = ssub.s32 16, 16
      %217 = vsyncadd [#allocation3], %s216
      %s219 = sshll.u32 [#allocation2], 4
      %s220 = int_to_ptr.vmem [resolvable:$true] %s219
      %222 = dma.vmem_to_hbm [thread:$0]  %s220, 16, %s3, [#allocation3]
    $region21: #{tpu_custom_call.1} parent=1 // pred_fallthru
      _
    // Predicated region
    $region22: #{tpu_custom_call.1} parent=1 // pred_check
      _
    $region23: #{tpu_custom_call.1} parent=1 // pred_check_branch
      %224 = sbr.rel (0) target = $region25
    $region24: #{tpu_custom_call.1} parent=1 // pred_region
      %s226 = ssub.s32 16, 16
      %227 = vsyncadd [#allocation5], %s226
      %s229 = sshll.u32 [#allocation4], 4
      %s230 = int_to_ptr.vmem [resolvable:$true] %s229
      %232 = dma.vmem_to_hbm [thread:$0]  %s230, 16, %s4, [#allocation5]
    $region25: #{tpu_custom_call.1} parent=1 // pred_fallthru
      _
    // Predicated region
    $region26: #{tpu_custom_call.1} parent=1 // pred_check
      _
    $region27: #{tpu_custom_call.1} parent=1 // pred_check_branch
      %234 = sbr.rel (0) target = $region29
    $region28: #{tpu_custom_call.1} parent=1 // pred_region
      %235 = dma.done [#allocation3], 16
    $region29: #{tpu_custom_call.1} parent=1 // pred_fallthru
      _
    // Predicated region
    $region30: #{tpu_custom_call.1} parent=1 // pred_check
      _
    $region31: #{tpu_custom_call.1} parent=1 // pred_check_branch
      %237 = sbr.rel (0) target = $region33
    $region32: #{tpu_custom_call.1} parent=1 // pred_region
      %238 = dma.done [#allocation5], 16
    $region33: #{tpu_custom_call.1} parent=1 // pred_fallthru
      _
    %239 = vsyncpa [#allocation3], 1
    %240 = vsyncpa [#allocation5], 1

</llo_original>
